<compile_context>
chip_gen: v5e
topology: v5e:2x2
jax: 0.10.0
libtpu: 0.0.40
codegen_flags: <defaults>
</compile_context>

<pallas_src>
import functools

import numpy as np
import jax
import jax.numpy as jnp
from jax.experimental import pallas as pl
from jax.experimental.pallas import tpu as pltpu


def _round_up(x, m):
    return (x + m - 1) // m * m


# ----------------------------- in-kernel math --------------------------------
_INV_SQRT2 = 0.7071067811865476


def _erf(x):
    # Abramowitz & Stegun 7.1.26 rational approximation (|err| < 1.5e-7).
    # Uses only exp + VPU ops, so it lowers on every TPU generation and keeps
    # nn.GELU()'s exact-erf semantics to within float32 noise.
    a1, a2, a3, a4, a5 = (0.254829592, -0.284496736, 1.421413741,
                          -1.453152027, 1.061405429)
    p = 0.3275911
    ax = jnp.abs(x)
    t = 1.0 / (1.0 + p * ax)
    poly = ((((a5 * t + a4) * t + a3) * t + a2) * t + a1) * t
    y = 1.0 - poly * jnp.exp(-ax * ax)
    return jnp.where(x >= 0, y, -y)


def _gelu_exact(x):
    return 0.5 * x * (1.0 + _erf(x * _INV_SQRT2))


# ----------------------------- fused FeedForward kernel ----------------------
def _ff_kernel(x_ref, g_ref, b_ref, w1_ref, b1_ref, w2_ref, b2_ref, o_ref, *,
               eps, matmul_dtype):
    # LayerNorm (f32 on the VPU).
    x = x_ref[...].astype(jnp.float32)
    mu = jnp.mean(x, axis=-1, keepdims=True)
    var = jnp.mean(jnp.square(x - mu), axis=-1, keepdims=True)
    xn = (x - mu) * jax.lax.rsqrt(var + eps) * g_ref[...] + b_ref[...]

    # Linear1 + bias (MXU), exact-erf GELU (VPU/EUP).  Dropout(p=0) == id.
    h = jnp.dot(xn.astype(matmul_dtype), w1_ref[...].astype(matmul_dtype),
                preferred_element_type=jnp.float32) + b1_ref[...]
    h = _gelu_exact(h)

    # Linear2 + bias (MXU).  Dropout(p=0) == id.
    y = jnp.dot(h.astype(matmul_dtype), w2_ref[...].astype(matmul_dtype),
                preferred_element_type=jnp.float32) + b2_ref[...]
    o_ref[...] = y.astype(o_ref.dtype)


def feed_forward(x, params, *, eps=1e-5, block_rows=128,
                 matmul_dtype=jnp.float32):
    """FeedForward forward pass: Linear2(GELU(Linear1(LayerNorm(x)))).

    params layout (built once at init, so no per-call reshapes/pads):
      gamma,beta : [1, dim]        (LayerNorm weight / bias)
      w1         : [dim, hidden]   (== torch linear1.weight.T)
      b1         : [1, hidden]
      w2         : [hidden, dim]   (== torch linear2.weight.T)
      b2         : [1, dim]
    """
    M, D = x.shape
    H = params["w1"].shape[1]

    # Row tiling: second-to-last block dim must be a multiple of 8 (or full).
    TM = min(block_rows, _round_up(M, 8))
    Mp = _round_up(M, TM)
    if Mp != M:
        x = jnp.pad(x, ((0, Mp - M), (0, 0)))  # zero rows; sliced off below

    out = pl.pallas_call(
        functools.partial(_ff_kernel, eps=eps, matmul_dtype=matmul_dtype),
        out_shape=jax.ShapeDtypeStruct((Mp, D), x.dtype),
        grid=(Mp // TM,),
        in_specs=[
            pl.BlockSpec((TM, D), lambda i: (i, 0)),   # x rows (pipelined)
            pl.BlockSpec((1, D), lambda i: (0, 0)),    # gamma
            pl.BlockSpec((1, D), lambda i: (0, 0)),    # beta
            pl.BlockSpec((D, H), lambda i: (0, 0)),    # w1 (VMEM resident)
            pl.BlockSpec((1, H), lambda i: (0, 0)),    # b1
            pl.BlockSpec((H, D), lambda i: (0, 0)),    # w2 (VMEM resident)
            pl.BlockSpec((1, D), lambda i: (0, 0)),    # b2
        ],
        out_specs=pl.BlockSpec((TM, D), lambda i: (i, 0)),
        compiler_params=pltpu.CompilerParams(
            dimension_semantics=("parallel",)),        # shard rows on v7x TCs
    )(x, params["gamma"], params["beta"], params["w1"], params["b1"],
      params["w2"], params["b2"])
    return out[:M]


# ----------------------------- pure-JAX reference (for checking) -------------
def feed_forward_ref(x, params, eps=1e-5):
    mu = jnp.mean(x, axis=-1, keepdims=True)
    var = jnp.mean(jnp.square(x - mu), axis=-1, keepdims=True)
    xn = (x - mu) / jnp.sqrt(var + eps) * params["gamma"] + params["beta"]
    h = xn @ params["w1"] + params["b1"]
    h = jax.nn.gelu(h, approximate=False)          # nn.GELU() default (erf)
    return h @ params["w2"] + params["b2"]


# ----------------------------- deterministic parameter init ------------------
def init_ff_params(key, dim, hidden_dim):
    k1, k2, k3, k4 = jax.random.split(key, 4)

    def unif(k, shape, fan_in):   # torch nn.Linear default init
        bound = 1.0 / np.sqrt(fan_in)
        return jax.random.uniform(k, shape, jnp.float32, -bound, bound)

    return {
        "gamma": jnp.ones((1, dim), jnp.float32),
        "beta": jnp.zeros((1, dim), jnp.float32),
        "w1": unif(k1, (dim, hidden_dim), dim),
        "b1": unif(k2, (1, hidden_dim), dim),
        "w2": unif(k3, (hidden_dim, dim), hidden_dim),
        "b2": unif(k4, (1, dim), hidden_dim),
    }


# ----------------------------- main ------------------------------------------
if __name__ == "__main__":
    DIM, HIDDEN, ROWS = 32, 64, 8       # CSNet toy scale: g_dim=32, ff=64, 8 nodes
    key = jax.random.PRNGKey(0)
    kp, kx = jax.random.split(key)

    params = init_ff_params(kp, DIM, HIDDEN)
    x = jax.random.normal(kx, (ROWS, DIM), jnp.float32)

    fwd = jax.jit(feed_forward)
    y = fwd(x, params)
    jax.block_until_ready(y)

    y_ref = feed_forward_ref(x, params)
    np.testing.assert_allclose(np.asarray(y), np.asarray(y_ref),
                               rtol=1e-4, atol=1e-4)
    assert y.shape == (ROWS, DIM)
    assert bool(jnp.all(jnp.isfinite(y)))
    print("KERNEL_OK")
</pallas_src>

<mosaic_0001>
module attributes {stable_mosaic.version = 11 : i64} {
  func.func @_ff_kernel(%arg0: i32, %arg1: memref<8x32xf32, #tpu.memory_space<vmem>>, %arg2: memref<1x32xf32, #tpu.memory_space<vmem>>, %arg3: memref<1x32xf32, #tpu.memory_space<vmem>>, %arg4: memref<32x64xf32, #tpu.memory_space<vmem>>, %arg5: memref<1x64xf32, #tpu.memory_space<vmem>>, %arg6: memref<64x32xf32, #tpu.memory_space<vmem>>, %arg7: memref<1x32xf32, #tpu.memory_space<vmem>>, %arg8: memref<8x32xf32, #tpu.memory_space<vmem>>) attributes {dimension_semantics = [#tpu.dimension_semantics<parallel>], iteration_bounds = array<i64: 1>, scalar_prefetch = 0 : i64, scratch_operands = 0 : i64, tpu.core_type = #tpu.core_type<tc>, window_params = [{transform_indices = @transform_0, window_bounds = array<i64: 8, 32>}, {pipeline_mode = #tpu.pipeline_mode<synchronous>, transform_indices = @transform_1, window_bounds = array<i64: 1, 32>}, {pipeline_mode = #tpu.pipeline_mode<synchronous>, transform_indices = @transform_2, window_bounds = array<i64: 1, 32>}, {pipeline_mode = #tpu.pipeline_mode<synchronous>, transform_indices = @transform_3, window_bounds = array<i64: 32, 64>}, {pipeline_mode = #tpu.pipeline_mode<synchronous>, transform_indices = @transform_4, window_bounds = array<i64: 1, 64>}, {pipeline_mode = #tpu.pipeline_mode<synchronous>, transform_indices = @transform_5, window_bounds = array<i64: 64, 32>}, {pipeline_mode = #tpu.pipeline_mode<synchronous>, transform_indices = @transform_6, window_bounds = array<i64: 1, 32>}, {transform_indices = @transform_7, window_bounds = array<i64: 8, 32>}]} {
    %c0 = arith.constant 0 : index
    %c0_0 = arith.constant 0 : index
    %0 = vector.load %arg1[%c0, %c0_0] : memref<8x32xf32, #tpu.memory_space<vmem>>, vector<8x32xf32>
    %cst = arith.constant dense<0.000000e+00> : vector<8xf32>
    %1 = vector.multi_reduction <add>, %0, %cst [1] : vector<8x32xf32> to vector<8xf32>
    %2 = vector.shape_cast %1 : vector<8xf32> to vector<8x1xf32>
    %cst_1 = arith.constant 3.200000e+01 : f32
    %3 = vector.broadcast %cst_1 : f32 to vector<8x1xf32>
    %4 = arith.divf %2, %3 : vector<8x1xf32>
    %5 = vector.broadcast %4 : vector<8x1xf32> to vector<8x32xf32>
    %6 = arith.subf %0, %5 : vector<8x32xf32>
    %7 = arith.mulf %6, %6 : vector<8x32xf32>
    %cst_2 = arith.constant dense<0.000000e+00> : vector<8xf32>
    %8 = vector.multi_reduction <add>, %7, %cst_2 [1] : vector<8x32xf32> to vector<8xf32>
    %9 = vector.shape_cast %8 : vector<8xf32> to vector<8x1xf32>
    %cst_3 = arith.constant 3.200000e+01 : f32
    %10 = vector.broadcast %cst_3 : f32 to vector<8x1xf32>
    %11 = arith.divf %9, %10 : vector<8x1xf32>
    %12 = vector.broadcast %4 : vector<8x1xf32> to vector<8x32xf32>
    %13 = arith.subf %0, %12 : vector<8x32xf32>
    %cst_4 = arith.constant 9.99999974E-6 : f32
    %14 = vector.broadcast %cst_4 : f32 to vector<8x1xf32>
    %15 = arith.addf %11, %14 : vector<8x1xf32>
    %16 = math.rsqrt %15 : vector<8x1xf32>
    %17 = vector.broadcast %16 : vector<8x1xf32> to vector<8x32xf32>
    %18 = arith.mulf %13, %17 : vector<8x32xf32>
    %c0_5 = arith.constant 0 : index
    %c0_6 = arith.constant 0 : index
    %19 = vector.load %arg2[%c0_5, %c0_6] : memref<1x32xf32, #tpu.memory_space<vmem>>, vector<1x32xf32>
    %20 = vector.broadcast %19 : vector<1x32xf32> to vector<8x32xf32>
    %21 = arith.mulf %18, %20 : vector<8x32xf32>
    %c0_7 = arith.constant 0 : index
    %c0_8 = arith.constant 0 : index
    %22 = vector.load %arg3[%c0_7, %c0_8] : memref<1x32xf32, #tpu.memory_space<vmem>>, vector<1x32xf32>
    %23 = vector.broadcast %22 : vector<1x32xf32> to vector<8x32xf32>
    %24 = arith.addf %21, %23 : vector<8x32xf32>
    %c0_9 = arith.constant 0 : index
    %c0_10 = arith.constant 0 : index
    %25 = vector.load %arg4[%c0_9, %c0_10] : memref<32x64xf32, #tpu.memory_space<vmem>>, vector<32x64xf32>
    %cst_11 = arith.constant dense<0.000000e+00> : vector<8x64xf32>
    %26 = tpu.matmul %24, %25, %cst_11 {dimension_numbers = #tpu.dot_dimension_numbers<[1], [0], [0], [1], [0, 0, 1, 1], [], []>} : vector<8x32xf32>, vector<32x64xf32>, vector<8x64xf32> -> vector<8x64xf32>
    %c0_12 = arith.constant 0 : index
    %c0_13 = arith.constant 0 : index
    %27 = vector.load %arg5[%c0_12, %c0_13] : memref<1x64xf32, #tpu.memory_space<vmem>>, vector<1x64xf32>
    %28 = vector.broadcast %27 : vector<1x64xf32> to vector<8x64xf32>
    %29 = arith.addf %26, %28 : vector<8x64xf32>
    %cst_14 = arith.constant 5.000000e-01 : f32
    %30 = vector.broadcast %cst_14 : f32 to vector<8x64xf32>
    %31 = arith.mulf %30, %29 : vector<8x64xf32>
    %cst_15 = arith.constant 0.707106769 : f32
    %32 = vector.broadcast %cst_15 : f32 to vector<8x64xf32>
    %33 = arith.mulf %29, %32 : vector<8x64xf32>
    %34 = math.absf %33 : vector<8x64xf32>
    %cst_16 = arith.constant 0.327591091 : f32
    %35 = vector.broadcast %cst_16 : f32 to vector<8x64xf32>
    %36 = arith.mulf %35, %34 : vector<8x64xf32>
    %cst_17 = arith.constant 1.000000e+00 : f32
    %37 = vector.broadcast %cst_17 : f32 to vector<8x64xf32>
    %38 = arith.addf %37, %36 : vector<8x64xf32>
    %cst_18 = arith.constant 1.000000e+00 : f32
    %39 = vector.broadcast %cst_18 : f32 to vector<8x64xf32>
    %40 = arith.divf %39, %38 : vector<8x64xf32>
    %cst_19 = arith.constant 1.06140542 : f32
    %41 = vector.broadcast %cst_19 : f32 to vector<8x64xf32>
    %42 = arith.mulf %41, %40 : vector<8x64xf32>
    %cst_20 = arith.constant -1.45315206 : f32
    %43 = vector.broadcast %cst_20 : f32 to vector<8x64xf32>
    %44 = arith.addf %42, %43 : vector<8x64xf32>
    %45 = arith.mulf %44, %40 : vector<8x64xf32>
    %cst_21 = arith.constant 1.42141378 : f32
    %46 = vector.broadcast %cst_21 : f32 to vector<8x64xf32>
    %47 = arith.addf %45, %46 : vector<8x64xf32>
    %48 = arith.mulf %47, %40 : vector<8x64xf32>
    %cst_22 = arith.constant -0.284496725 : f32
    %49 = vector.broadcast %cst_22 : f32 to vector<8x64xf32>
    %50 = arith.addf %48, %49 : vector<8x64xf32>
    %51 = arith.mulf %50, %40 : vector<8x64xf32>
    %cst_23 = arith.constant 0.254829586 : f32
    %52 = vector.broadcast %cst_23 : f32 to vector<8x64xf32>
    %53 = arith.addf %51, %52 : vector<8x64xf32>
    %54 = arith.mulf %53, %40 : vector<8x64xf32>
    %cst_24 = arith.constant 0.000000e+00 : f32
    %55 = vector.broadcast %cst_24 : f32 to vector<8x64xf32>
    %56 = arith.subf %55, %34 : vector<8x64xf32>
    %57 = arith.mulf %56, %34 : vector<8x64xf32>
    %58 = math.exp %57 : vector<8x64xf32>
    %59 = arith.mulf %54, %58 : vector<8x64xf32>
    %cst_25 = arith.constant 1.000000e+00 : f32
    %60 = vector.broadcast %cst_25 : f32 to vector<8x64xf32>
    %61 = arith.subf %60, %59 : vector<8x64xf32>
    %cst_26 = arith.constant 0.000000e+00 : f32
    %62 = vector.broadcast %cst_26 : f32 to vector<8x64xf32>
    %63 = arith.cmpf oge, %33, %62 : vector<8x64xf32>
    %cst_27 = arith.constant 0.000000e+00 : f32
    %64 = vector.broadcast %cst_27 : f32 to vector<8x64xf32>
    %65 = arith.subf %64, %61 : vector<8x64xf32>
    %66 = arith.select %63, %61, %65 : vector<8x64xi1>, vector<8x64xf32>
    %cst_28 = arith.constant 1.000000e+00 : f32
    %67 = vector.broadcast %cst_28 : f32 to vector<8x64xf32>
    %68 = arith.addf %67, %66 : vector<8x64xf32>
    %69 = arith.mulf %31, %68 : vector<8x64xf32>
    %c0_29 = arith.constant 0 : index
    %c0_30 = arith.constant 0 : index
    %70 = vector.load %arg6[%c0_29, %c0_30] : memref<64x32xf32, #tpu.memory_space<vmem>>, vector<64x32xf32>
    %cst_31 = arith.constant dense<0.000000e+00> : vector<8x32xf32>
    %71 = tpu.matmul %69, %70, %cst_31 {dimension_numbers = #tpu.dot_dimension_numbers<[1], [0], [0], [1], [0, 0, 1, 1], [], []>} : vector<8x64xf32>, vector<64x32xf32>, vector<8x32xf32> -> vector<8x32xf32>
    %c0_32 = arith.constant 0 : index
    %c0_33 = arith.constant 0 : index
    %72 = vector.load %arg7[%c0_32, %c0_33] : memref<1x32xf32, #tpu.memory_space<vmem>>, vector<1x32xf32>
    %73 = vector.broadcast %72 : vector<1x32xf32> to vector<8x32xf32>
    %74 = arith.addf %71, %73 : vector<8x32xf32>
    %c0_34 = arith.constant 0 : index
    %c0_35 = arith.constant 0 : index
    %75 = vector.load %arg8[%c0_34, %c0_35] : memref<8x32xf32, #tpu.memory_space<vmem>>, vector<8x32xf32>
    tpu.vector_store %arg8[%c0_34, %c0_35], %74 {strides = array<i32>} : memref<8x32xf32, #tpu.memory_space<vmem>>, vector<8x32xf32>,
    return
  }
  func.func @transform_0(%arg0: i32) -> (i32, i32) {
    %c0_i32 = arith.constant 0 : i32
    %c0_i32_0 = arith.constant 0 : i32
    return %arg0, %c0_i32 : i32, i32
  }
  func.func @transform_1(%arg0: i32) -> (i32, i32) {
    %c0_i32 = arith.constant 0 : i32
    %c0_i32_0 = arith.constant 0 : i32
    %c0_i32_1 = arith.constant 0 : i32
    return %c0_i32, %c0_i32_0 : i32, i32
  }
  func.func @transform_2(%arg0: i32) -> (i32, i32) {
    %c0_i32 = arith.constant 0 : i32
    %c0_i32_0 = arith.constant 0 : i32
    %c0_i32_1 = arith.constant 0 : i32
    return %c0_i32, %c0_i32_0 : i32, i32
  }
  func.func @transform_3(%arg0: i32) -> (i32, i32) {
    %c0_i32 = arith.constant 0 : i32
    %c0_i32_0 = arith.constant 0 : i32
    %c0_i32_1 = arith.constant 0 : i32
    return %c0_i32, %c0_i32_0 : i32, i32
  }
  func.func @transform_4(%arg0: i32) -> (i32, i32) {
    %c0_i32 = arith.constant 0 : i32
    %c0_i32_0 = arith.constant 0 : i32
    %c0_i32_1 = arith.constant 0 : i32
    return %c0_i32, %c0_i32_0 : i32, i32
  }
  func.func @transform_5(%arg0: i32) -> (i32, i32) {
    %c0_i32 = arith.constant 0 : i32
    %c0_i32_0 = arith.constant 0 : i32
    %c0_i32_1 = arith.constant 0 : i32
    return %c0_i32, %c0_i32_0 : i32, i32
  }
  func.func @transform_6(%arg0: i32) -> (i32, i32) {
    %c0_i32 = arith.constant 0 : i32
    %c0_i32_0 = arith.constant 0 : i32
    %c0_i32_1 = arith.constant 0 : i32
    return %c0_i32, %c0_i32_0 : i32, i32
  }
  func.func @transform_7(%arg0: i32) -> (i32, i32) {
    %c0_i32 = arith.constant 0 : i32
    %c0_i32_0 = arith.constant 0 : i32
    return %arg0, %c0_i32 : i32, i32
  }
}

</mosaic_0001>

<llo_original>
// kernel: feed_forward.1
$region0: #{feed_forward.1}
  #allocation0 [shape = 'u32[]', space=smem, size = 0x4, offset = 0x4, fixed_abs, tag = 'smem constant byte address 0x4 - core index']
  #allocation1 [shape = 'u32[72,128]{1,0:T(1,128)}', space=vmem, size = 0x9000, scoped, tag = 'internal scratch']
  %s0 = inlined_call_operand.vmem [shape: f32[8,32], index: 0, kind: input, shape index: {}]
  %s1 = inlined_call_operand.vmem [shape: f32[1,32], index: 1, kind: input, shape index: {}]
  %s2 = inlined_call_operand.vmem [shape: f32[1,32], index: 2, kind: input, shape index: {}]
  %s3 = inlined_call_operand.vmem [shape: f32[32,64], index: 3, kind: input, shape index: {}]
  %s4 = inlined_call_operand.vmem [shape: f32[1,64], index: 4, kind: input, shape index: {}]
  %s5 = inlined_call_operand.vmem [shape: f32[64,32], index: 5, kind: input, shape index: {}]
  %s6 = inlined_call_operand.vmem [shape: f32[1,32], index: 6, kind: input, shape index: {}]
  %s7 = inlined_call_operand.hbm [shape: f32[8,32], index: 7, kind: output, shape index: {}]
  %s8 = sld [smem:[#allocation0]]
  $region38: #{feed_forward.1} parent=0
    _
  %s10 = ssub.s32 1, %s8
  %s11 = scalar_select 0, %s10, %s8
  $region1: #{feed_forward.1} parent=0
    #allocation2 [shape = 'u8[4096]{0}', space=vmem, size = 0x1000, scoped, tag = 'output window, operand 0, single buffered']
    #allocation3 [shape = 's32[1]{0}', space=sflag, size = 0x4, scoped, tag = 'scoped memory for feed_forward.1']
    %12 = vsyncpa [#allocation3], 0
    // Predicated region
    $region2: #{feed_forward.1} parent=1 // pred_check
      _
    $region3: #{feed_forward.1} parent=1 // pred_check_branch
      %14 = sbr.rel (0) target = $region5
    $region4: #{feed_forward.1} parent=1 // pred_region
      _
    $region5: #{feed_forward.1} parent=1 // pred_fallthru
      _
    // Predicated region
    $region6: #{feed_forward.1} parent=1 // pred_check
      _
    $region7: #{feed_forward.1} parent=1 // pred_check_branch
      %16 = sbr.rel (0) target = $region9
    $region8: #{feed_forward.1} parent=1 // pred_region
      _
    $region9: #{feed_forward.1} parent=1 // pred_fallthru
      _
    // Predicated region
    $region10: #{feed_forward.1} parent=1 // pred_check
      _
    $region11: #{feed_forward.1} parent=1 // pred_check_branch
      %18 = sbr.rel (0) target = $region13
    $region12: #{feed_forward.1} parent=1 // pred_region
      _
    $region13: #{feed_forward.1} parent=1 // pred_fallthru
      _
    // Predicated region
    $region14: #{feed_forward.1} parent=1 // pred_check
      _
    $region15: #{feed_forward.1} parent=1 // pred_check_branch
      %20 = sbr.rel (0) target = $region17
    $region16: #{feed_forward.1} parent=1 // pred_region
      _
    $region17: #{feed_forward.1} parent=1 // pred_fallthru
      _
    // Predicated region
    $region18: #{feed_forward.1} parent=1 // pred_check
      _
    $region19: #{feed_forward.1} parent=1 // pred_check_branch
      %22 = sbr.rel (0) target = $region21
    $region20: #{feed_forward.1} parent=1 // pred_region
      _
    $region21: #{feed_forward.1} parent=1 // pred_fallthru
      _
    // Predicated region
    $region22: #{feed_forward.1} parent=1 // pred_check
      _
    $region23: #{feed_forward.1} parent=1 // pred_check_branch
      %24 = sbr.rel (0) target = $region25
    $region24: #{feed_forward.1} parent=1 // pred_region
      _
    $region25: #{feed_forward.1} parent=1 // pred_fallthru
      _
    // Predicated region
    $region26: #{feed_forward.1} parent=1 // pred_check
      _
    $region27: #{feed_forward.1} parent=1 // pred_check_branch
      %26 = sbr.rel (0) target = $region29
    $region28: #{feed_forward.1} parent=1 // pred_region
      _
    $region29: #{feed_forward.1} parent=1 // pred_fallthru
      _
    %v27 = vld [vmem:[%s0] sm:$0xff]
    %vm28 = vcmask 261120
    %v29 = vsel %vm28, %v27, 0.0
    %30 = vadd.xlane.f32.xlu0 %v29
    %v31 = vpop.xlane.xlu0 %30
    %v32 = vrcp.pop 32.0
    %v33 = vmul.f32 32.0, %v32
    %v34 = vsub.f32 1.0, %v33
    %v35 = vmul.f32 %v32, %v34
    %v36 = vadd.f32 %v32, %v35
    %vm37 = vweird.f32 %v32
    %v38 = vsel %vm37, %v32, %v36
    %v39 = vmul.f32 %v31, %v38
    %v40 = vsub.f32 %v27, %v39
    %v41 = vmul.f32 %v40, %v40
    %v42 = vsel %vm28, %v41, 0.0
    %43 = vadd.xlane.f32.xlu0 %v42
    %v44 = vpop.xlane.xlu0 %43
    %v45 = vmul.f32 %v44, %v38
    %v46 = vadd.f32 %v45, 1e-05
    %v47 = vrsqrt.pop %v46
    %v48 = vmul.f32 %v47, %v46
    %v49 = vmul.f32 %v48, %v47
    %v50 = vmul.f32 0.5, %v49
    %v51 = vsub.f32 1.5, %v50
    %v52 = vmul.f32 %v47, %v51
    %vm53 = vweird.f32 %v46
    %vm54 = vweird.f32 %v47
    %vm55 = vmor %vm53, %vm54
    %v56 = vsel %vm55, %v47, %v52
    %v57 = vmul.f32 %v40, %v56
    %v58 = vld [vmem:[%s1] sm:$0x1]
    %v60 = vperm.slane %v58, 0
    %v62 = vmul.f32 %v57, %v60
    %v63 = vld [vmem:[%s2] sm:$0x1]
    %v65 = vperm.slane %v63, 0
    %v67 = vadd.f32 %v62, %v65
    %v68 = vld [vmem:[%s3] sm:$0xff]
    %v69 = vld [vmem:[%s3 + $0x8] sm:$0xff]
    %v70 = vld [vmem:[%s3 + $0x10] sm:$0xff]
    %v71 = vld [vmem:[%s3 + $0x18] sm:$0xff]
    %v72 = vld [vmem:[%s4] sm:$0x1]
    %v74 = vperm.slane %v72, 0
    %v77 = vsel %vm28, %v67, 0
    %79 = vmatpush.msra.mxu0 0.0
    %80 = vmatpush.msra.mxu0 0.0
    %81 = vmatpush.msra.mxu0 0.0
    %82 = vmatpush.msra.mxu0 0.0
    %83 = vmatpush.msra.mxu0 0.0
    %84 = vmatpush.msra.mxu0 0.0
    %85 = vmatpush.msra.mxu0 0.0
    %86 = vmatpush.msra.mxu0 0.0
    %87 = vmatpush.msra.mxu0 0.0
    %88 = vmatpush.msra.mxu0 0.0
    %89 = vmatpush.msra.mxu0 0.0
    %90 = vmatpush.msra.mxu0 0.0
    %91 = vmatpush.msra.mxu0 %v71
    %92 = vmatpush.msra.mxu0 %v70
    %93 = vmatpush.msra.mxu0 %v69
    %94 = vmatpush.msra.mxu0 %v68
    %95 = vmatmul.f32.gmra.mxu0 %v77
    %v96 = vpop.f32.mrf.mxu0
    %v97 = vadd.f32 %v74, %v96
    %98 = vdwg.mxu0
    %v99 = vmul.f32 %v97, 0.5
    %v100 = vmul.f32 %v97, 0.70710677
    %v101 = vand.u32 2147483647, %v100
    %v102 = vmul.f32 %v101, 0.3275911
    %v103 = vadd.f32 %v102, 1.0
    %v104 = vrcp.pop %v103
    %v105 = vmul.f32 %v103, %v104
    %v106 = vsub.f32 1.0, %v105
    %v107 = vmul.f32 %v104, %v106
    %v108 = vadd.f32 %v104, %v107
    %vm109 = vweird.f32 %v103
    %vm110 = vweird.f32 %v104
    %vm111 = vmor %vm109, %vm110
    %v112 = vsel %vm111, %v104, %v108
    %v113 = vand.u32 2147483647, %v103
    %vm114 = vcmp.eq.f32.partialorder %v113, 8.507059e+37
    %v115 = vand.u32 %v103, 2147483648
    %v116 = vor.u32 1.1754944e-38, %v115
    %v117 = vsel %vm114, %v116, %v112
    %v118 = vmul.f32 1.0, %v117
    %v119 = vmul.f32 %v118, 1.0614054
    %v120 = vadd.f32 %v119, -1.4531521
    %v121 = vmul.f32 %v120, %v118
    %v122 = vadd.f32 %v121, 1.4214138
    %v123 = vmul.f32 %v122, %v118
    %v124 = vadd.f32 %v123, -0.28449672
    %v125 = vmul.f32 %v124, %v118
    %v126 = vadd.f32 %v125, 0.2548296
    %v127 = vmul.f32 %v126, %v118
    %v128 = vsub.f32 0.0, %v101
    %v129 = vmul.f32 %v128, %v101
    %v130 = vmul.f32 %v129, 1.442695
    %v131 = vpow.pop %v130
    %v132 = vmul.f32 %v127, %v131
    %v133 = vsub.f32 1.0, %v132
    %vm134 = vcmp.ge.f32.partialorder %v100, 0.0
    %v135 = vsub.f32 0.0, %v133
    %v136 = vsel %vm134, %v133, %v135
    %v137 = vadd.f32 %v136, 1.0
    %v138 = vmul.f32 %v99, %v137
    %v139 = vld [vmem:[%s5] sm:$0xff]
    %v140 = vld [vmem:[%s5 + $0x8] sm:$0xff]
    %v141 = vld [vmem:[%s5 + $0x10] sm:$0xff]
    %v142 = vld [vmem:[%s5 + $0x18] sm:$0xff]
    %v143 = vld [vmem:[%s5 + $0x20] sm:$0xff]
    %v144 = vld [vmem:[%s5 + $0x28] sm:$0xff]
    %v145 = vld [vmem:[%s5 + $0x30] sm:$0xff]
    %v146 = vld [vmem:[%s5 + $0x38] sm:$0xff]
    %v147 = vld [vmem:[%s6] sm:$0x1]
    %v149 = vperm.slane %v147, 0
    %vm151 = vcmask 523264
    %v153 = vsel %vm151, %v138, 0
    %155 = vmatpush.msra.mxu0 0.0
    %156 = vmatpush.msra.mxu0 0.0
    %157 = vmatpush.msra.mxu0 0.0
    %158 = vmatpush.msra.mxu0 0.0
    %159 = vmatpush.msra.mxu0 0.0
    %160 = vmatpush.msra.mxu0 0.0
    %161 = vmatpush.msra.mxu0 0.0
    %162 = vmatpush.msra.mxu0 0.0
    %163 = vmatpush.msra.mxu0 %v146
    %164 = vmatpush.msra.mxu0 %v145
    %165 = vmatpush.msra.mxu0 %v144
    %166 = vmatpush.msra.mxu0 %v143
    %167 = vmatpush.msra.mxu0 %v142
    %168 = vmatpush.msra.mxu0 %v141
    %169 = vmatpush.msra.mxu0 %v140
    %170 = vmatpush.msra.mxu0 %v139
    %171 = vmatmul.f32.gmra.mxu0 %v153
    %v172 = vpop.f32.mrf.mxu0
    %v173 = vadd.f32 %v149, %v172
    %174 = vdwg.mxu0
    %175 = vst.msk [vmem:[#allocation2] sm:$0xff] %vm28, %v173
    // Predicated region
    $region30: #{feed_forward.1} parent=1 // pred_check
      _
    $region31: #{feed_forward.1} parent=1 // pred_check_branch
      %177 = sbr.rel (0) target = $region33
    $region32: #{feed_forward.1} parent=1 // pred_region
      %179 = vsyncadd [#allocation3], 0
      %s181 = sshll.u32 [#allocation2], 4
      %s182 = int_to_ptr.vmem [resolvable:$true] %s181
      %s183 = sshll.u32 %s7, 4
      %s184 = int_to_ptr.hbm [resolvable:$true] %s183
      %186 = dma.vmem_to_hbm [thread:$0]  %s182, 128, %s184, [#allocation3]
    $region33: #{feed_forward.1} parent=1 // pred_fallthru
      _
    // Predicated region
    $region34: #{feed_forward.1} parent=1 // pred_check
      _
    $region35: #{feed_forward.1} parent=1 // pred_check_branch
      %188 = sbr.rel (0) target = $region37
    $region36: #{feed_forward.1} parent=1 // pred_region
      %190 = dma.done [#allocation3], 128
    $region37: #{feed_forward.1} parent=1 // pred_fallthru
      _
    %191 = vsyncpa [#allocation3], 1

</llo_original>
